<compile_context>
chip_gen: v7x
topology: tpu7x:2x2x1
jax: 0.10.0
libtpu: 0.0.40
codegen_flags: <defaults>
</compile_context>

<pallas_src>
import functools
import math

import jax
import jax.numpy as jnp
from jax.experimental import pallas as pl
from jax.experimental.pallas import tpu as pltpu

_LANE = 128
_MAX_LANES = 2048                        # widest lane-dense slab (multiple of 128)
_TARGET_BLOCK_BYTES = 4 * 1024 * 1024    # per-buffer, per-tile cap (max itemsize)
_VMEM_STREAM_BUDGET = 40 * 1024 * 1024   # total double-buffered streamed bytes
_VMEM_LIMIT_CAP = 48 * 1024 * 1024       # scoped-VMEM request ceiling (v7x-safe)

_OPS = {
    "add": lambda a, b: a + b,
    "subtract": lambda a, b: a - b,
    "multiply": lambda a, b: a * b,
    "divide": lambda a, b: a / b,
}


def _make_binop_kernel(op_name: str, out_dtype):
    """Kernel body: o = op(a, b) elementwise; cast done in-kernel."""
    op = _OPS[op_name]

    def kernel(a_ref, b_ref, o_ref):
        a = a_ref[...].astype(out_dtype)
        b = b_ref[...].astype(out_dtype)
        # A resident (1, lanes) operand broadcasts against the streamed
        # (tile_rows, lanes) slab via ordinary jnp broadcasting.
        o_ref[...] = op(a, b)

    return kernel


def _trailing_period(shape, out_shape):
    """If broadcasting `shape` to `out_shape` yields a flattened array that is
    periodic with period prod(shape) (broadcast only along leading axes),
    return that period; else None."""
    r = len(out_shape)
    s = (1,) * (r - len(shape)) + tuple(shape)
    j = 0
    while j < r and s[j] == 1:
        j += 1
    if any(s[i] != out_shape[i] for i in range(j, r)):
        return None
    return math.prod(out_shape[j:r])  # == 1 for a scalar


def _choose_layout(n: int, streamed_itemsizes):
    """Pick (lanes, tile_rows) for the lane-dense (rows, lanes) slab."""
    min_item = min(streamed_itemsizes)
    max_item = max(streamed_itemsizes)
    # Sub-32-bit dtypes pack along sublanes (f32->8, bf16->16, int8->32 rows per
    # vreg); keep main blocks a whole number of packed vregs.
    min_rows = 8 * max(1, 4 // min_item)

    # Widen lanes while the smallest block still fits the data (avoids blowing
    # up tiny inputs with padding).
    lanes = _LANE
    while lanes < _MAX_LANES and lanes * 2 * min_rows <= n:
        lanes *= 2

    # Grow tile_rows against explicit budgets:
    #   * <= _TARGET_BLOCK_BYTES per buffer per tile (largest itemsize),
    #   * <= _VMEM_STREAM_BUDGET for all double-buffered streamed buffers,
    #   * keep >= 2 grid steps (megacore sharing on v7x + pipeline overlap).
    tile_rows = min_rows
    while True:
        nxt = tile_rows * 2
        if nxt * lanes * max_item > _TARGET_BLOCK_BYTES:
            break
        if 2 * nxt * lanes * sum(streamed_itemsizes) > _VMEM_STREAM_BUDGET:
            break
        if nxt * lanes * 2 > n:
            break
        tile_rows = nxt
    return lanes, tile_rows


@functools.partial(jax.jit, static_argnames=("op_name",))
def _elementwise_binop(input1: jax.Array, input2: jax.Array, op_name: str):
    if op_name not in _OPS:
        raise ValueError(f"unsupported op: {op_name}")

    out_shape = jnp.broadcast_shapes(input1.shape, input2.shape)
    out_dtype = jnp.result_type(input1.dtype, input2.dtype)
    if op_name == "divide" and not jnp.issubdtype(out_dtype, jnp.floating):
        out_dtype = jnp.float32  # torch true-division semantics for ints
    # TODO(synk): jnp.result_type does not exactly match torch promotion for
    # some mixed-dtype cases (f16+bf16, int+bool, weak scalars).

    n = math.prod(out_shape) if out_shape else 1
    if n == 0:
        return jnp.zeros(out_shape, out_dtype)

    # ------------------------------------------------------------------
    # Classify operands: stream full-size operands; keep scalars / trailing-
    # periodic small operands resident in VMEM (no materialized broadcast).
    # ------------------------------------------------------------------
    def classify(x):
        if x.shape == out_shape:
            return "stream", None
        p = _trailing_period(x.shape, out_shape)
        if p is not None and _LANE % p == 0:
            return "resident", p
        return "stream", None  # general broadcast: fall back to materializing

    mode1, p1 = classify(input1)
    mode2, p2 = classify(input2)
    if mode1 == "resident" and mode2 == "resident":
        # Degenerate case (output has <= 128 elements); stream input1 instead so
        # the kernel always has one full-block operand.
        mode1, p1 = "stream", None
    if mode1 == "stream" and input1.shape != out_shape:
        input1 = jnp.broadcast_to(input1, out_shape)
    if mode2 == "stream" and input2.shape != out_shape:
        input2 = jnp.broadcast_to(input2, out_shape)

    streamed_itemsizes = [jnp.dtype(out_dtype).itemsize]
    if mode1 == "stream":
        streamed_itemsizes.append(jnp.dtype(input1.dtype).itemsize)
    if mode2 == "stream":
        streamed_itemsizes.append(jnp.dtype(input2.dtype).itemsize)

    lanes, tile_rows = _choose_layout(n, streamed_itemsizes)

    # Pad only to a multiple of `lanes` (<= 127 elements); the row-dimension
    # edge block is clipped by Pallas (masked stores), so no block-size pad.
    padded_n = pl.cdiv(n, lanes) * lanes
    rows = padded_n // lanes
    grid = (pl.cdiv(rows, tile_rows),)

    stream_spec = pl.BlockSpec((tile_rows, lanes), lambda i: (i, 0))
    resident_spec = pl.BlockSpec((1, lanes), lambda i: (0, 0))

    def prep(x, mode, p):
        if mode == "stream":
            flat = x.reshape(-1)
            if padded_n != n:
                # Pad with 1 so padded lanes never hit 0/0 for divide; results
                # in the tail are sliced off below.  Edge *rows* of the last
                # grid block may compute on stale VMEM (NaN/Inf possible) but
                # those stores are masked -- harmless on TPU (no FP traps).
                flat = jnp.pad(flat, (0, padded_n - n), constant_values=1)
            return flat.reshape(rows, lanes), stream_spec
        # Resident row: the flattened broadcast of this operand is periodic with
        # period p, and p | lanes, so one tiled lane-row reproduces the pattern
        # for every output row.  Only `lanes` elements ever touch HBM.
        row = jnp.tile(x.reshape(-1), lanes // p).reshape(1, lanes)
        return row, resident_spec

    a2d, a_spec = prep(input1, mode1, p1)
    b2d, b_spec = prep(input2, mode2, p2)

    # Explicit scoped-VMEM request: streamed double-buffered footprint + headroom.
    stream_bytes = 2 * tile_rows * lanes * sum(streamed_itemsizes)
    vmem_limit = int(min(_VMEM_LIMIT_CAP, max(stream_bytes + (8 << 20), 16 << 20)))

    out2d = pl.pallas_call(
        _make_binop_kernel(op_name, out_dtype),
        out_shape=jax.ShapeDtypeStruct((rows, lanes), out_dtype),
        grid=grid,
        in_specs=[a_spec, b_spec],
        out_specs=stream_spec,
        compiler_params=pltpu.CompilerParams(
            dimension_semantics=("parallel",),
            vmem_limit_bytes=vmem_limit,
        ),
    )(a2d, b2d)

    out_flat = out2d.reshape(-1)
    if padded_n != n:
        out_flat = out_flat[:n]
    return out_flat.reshape(out_shape)


class Model:
    """JAX/Pallas analogue of the PyTorch Model(op) wrapper."""

    def __init__(self, op_name: str = "add"):
        self.op_name = op_name

    def __call__(self, input1: jax.Array, input2: jax.Array) -> jax.Array:
        return _elementwise_binop(input1, input2, self.op_name)


if __name__ == "__main__":
    key = jax.random.PRNGKey(0)
    k1, k2, k3, k4 = jax.random.split(key, 4)

    ok = True

    # NCHW-shaped inputs, as in the PyTorch test (elementwise -> same shapes).
    x1 = jax.random.normal(k1, (2, 4, 16, 16), dtype=jnp.float32)
    x2 = jax.random.normal(k2, (2, 4, 16, 16), dtype=jnp.float32) + 2.0  # away from 0
    refs = {
        "add": x1 + x2,
        "subtract": x1 - x2,
        "multiply": x1 * x2,
        "divide": x1 / x2,
    }
    for op_name, ref in refs.items():
        out = jax.block_until_ready(Model(op_name)(x1, x2))
        if out.shape != ref.shape or not jnp.allclose(out, ref, atol=1e-5, rtol=1e-5):
            ok = False
            print(f"MISMATCH for op={op_name}")

    # Larger slab: exercises the wide-lane / grown-tile path.
    y1 = jax.random.normal(k3, (2, 8, 128, 256), dtype=jnp.float32)
    y2 = jax.random.normal(k4, (2, 8, 128, 256), dtype=jnp.float32) + 2.0
    out = jax.block_until_ready(Model("add")(y1, y2))
    if not jnp.allclose(out, y1 + y2, atol=1e-5, rtol=1e-5):
        ok = False
        print("MISMATCH for large add")

    # Ragged element count (lane padding + edge-block clipping) with divide.
    z1 = jax.random.normal(k3, (3, 5, 7), dtype=jnp.float32)
    z2 = jax.random.normal(k4, (3, 5, 7), dtype=jnp.float32) + 2.0
    out = jax.block_until_ready(Model("divide")(z1, z2))
    if not jnp.allclose(out, z1 / z2, atol=1e-5, rtol=1e-5):
        ok = False
        print("MISMATCH for ragged divide")

    # Broadcasting row vector: resident (1, lanes) operand path (no broadcast_to).
    b2 = jax.random.normal(k2, (16,), dtype=jnp.float32)
    out = jax.block_until_ready(Model("multiply")(x1, b2))
    if not jnp.allclose(out, x1 * b2, atol=1e-5, rtol=1e-5):
        ok = False
        print("MISMATCH for broadcast multiply")

    # Broadcasting scalar: resident path with period 1.
    s = jnp.array(2.5, dtype=jnp.float32)
    out = jax.block_until_ready(Model("subtract")(x1, s))
    if not jnp.allclose(out, x1 - s, atol=1e-5, rtol=1e-5):
        ok = False
        print("MISMATCH for scalar subtract")

    if ok:
        print("KERNEL_OK")
</pallas_src>

<mosaic_0001>
module attributes {stable_mosaic.version = 11 : i64} {
  func.func @kernel(%arg0: i32, %arg1: memref<8x256xf32, #tpu.memory_space<vmem>>, %arg2: memref<8x256xf32, #tpu.memory_space<vmem>>, %arg3: memref<8x256xf32, #tpu.memory_space<vmem>>) attributes {dimension_semantics = [#tpu.dimension_semantics<parallel>], iteration_bounds = array<i64: 1>, scalar_prefetch = 0 : i64, scratch_operands = 0 : i64, tpu.core_type = #tpu.core_type<tc>, window_params = [{transform_indices = @transform_0, window_bounds = array<i64: 8, 256>}, {transform_indices = @transform_1, window_bounds = array<i64: 8, 256>}, {transform_indices = @transform_2, window_bounds = array<i64: 8, 256>}]} {
    %c0 = arith.constant 0 : index
    %c0_0 = arith.constant 0 : index
    %0 = vector.load %arg1[%c0, %c0_0] : memref<8x256xf32, #tpu.memory_space<vmem>>, vector<8x256xf32>
    %c0_1 = arith.constant 0 : index
    %c0_2 = arith.constant 0 : index
    %1 = vector.load %arg2[%c0_1, %c0_2] : memref<8x256xf32, #tpu.memory_space<vmem>>, vector<8x256xf32>
    %2 = arith.addf %0, %1 : vector<8x256xf32>
    %c0_3 = arith.constant 0 : index
    %c0_4 = arith.constant 0 : index
    %3 = vector.load %arg3[%c0_3, %c0_4] : memref<8x256xf32, #tpu.memory_space<vmem>>, vector<8x256xf32>
    tpu.vector_store %arg3[%c0_3, %c0_4], %2 {strides = array<i32>} : memref<8x256xf32, #tpu.memory_space<vmem>>, vector<8x256xf32>,
    return
  }
  func.func @transform_0(%arg0: i32) -> (i32, i32) {
    %c0_i32 = arith.constant 0 : i32
    %c0_i32_0 = arith.constant 0 : i32
    return %arg0, %c0_i32 : i32, i32
  }
  func.func @transform_1(%arg0: i32) -> (i32, i32) {
    %c0_i32 = arith.constant 0 : i32
    %c0_i32_0 = arith.constant 0 : i32
    return %arg0, %c0_i32 : i32, i32
  }
  func.func @transform_2(%arg0: i32) -> (i32, i32) {
    %c0_i32 = arith.constant 0 : i32
    %c0_i32_0 = arith.constant 0 : i32
    return %arg0, %c0_i32 : i32, i32
  }
}

</mosaic_0001>

<llo_original>
// kernel: _elementwise_binop.1
$region0: #{_elementwise_binop.1}
  #allocation0 [shape = 'u32[]', space=smem, size = 0x4, offset = 0x4, fixed_abs, tag = 'smem constant byte address 0x4 - core index']
  #allocation1 [shape = 'u32[144,128]{1,0:T(1,128)}', space=vmem, size = 0x12000, scoped, tag = 'internal scratch']
  %s0 = inlined_call_operand.vmem [shape: f32[8,256], index: 0, kind: input, shape index: {}]
  %s1 = inlined_call_operand.vmem [shape: f32[8,256], index: 1, kind: input, shape index: {}]
  %s2 = inlined_call_operand.vmem [shape: f32[8,256], index: 2, kind: output, shape index: {}]
  %s3 = sld [smem:[#allocation0]]
  $region18: #{_elementwise_binop.1} parent=0
    _
  %s5 = ssub.s32 1, %s3
  %s6 = scalar_select 0, %s5, %s3
  // Predicated region
  $region2: #{_elementwise_binop.1} parent=0 // pred_check
    _
  $region3: #{_elementwise_binop.1} parent=0 // pred_check_branch
    %8 = sbr.rel (0) target = $region5
  $region4: #{_elementwise_binop.1} parent=0 // pred_region
    _
  $region5: #{_elementwise_binop.1} parent=0 // pred_fallthru
    _
  // Predicated region
  $region6: #{_elementwise_binop.1} parent=0 // pred_check
    _
  $region7: #{_elementwise_binop.1} parent=0 // pred_check_branch
    %10 = sbr.rel (0) target = $region9
  $region8: #{_elementwise_binop.1} parent=0 // pred_region
    _
  $region9: #{_elementwise_binop.1} parent=0 // pred_fallthru
    _
  %v11 = vld [vmem:[%s0] sm:$0xff]
  %v12 = vld [vmem:[%s0 + $0x8] sm:$0xff]
  %v13 = vld [vmem:[%s1] sm:$0xff]
  %v14 = vld [vmem:[%s1 + $0x8] sm:$0xff]
  %v15 = vadd.f32 %v11, %v13
  %v16 = vadd.f32 %v12, %v14
  %17 = vst [vmem:[%s2] sm:$0xff] %v15
  %18 = vst [vmem:[%s2 + $0x8] sm:$0xff] %v16
  // Predicated region
  $region10: #{_elementwise_binop.1} parent=0 // pred_check
    _
  $region11: #{_elementwise_binop.1} parent=0 // pred_check_branch
    %20 = sbr.rel (0) target = $region13
  $region12: #{_elementwise_binop.1} parent=0 // pred_region
    _
  $region13: #{_elementwise_binop.1} parent=0 // pred_fallthru
    _
  // Predicated region
  $region14: #{_elementwise_binop.1} parent=0 // pred_check
    _
  $region15: #{_elementwise_binop.1} parent=0 // pred_check_branch
    %22 = sbr.rel (0) target = $region17
  $region16: #{_elementwise_binop.1} parent=0 // pred_region
    _
  $region17: #{_elementwise_binop.1} parent=0 // pred_fallthru
    _

</llo_original>
